<compile_context>
chip_gen: v6e
topology: v6e:2x2x1
jax: 0.10.0
libtpu: 0.0.40
codegen_flags: <defaults>
</compile_context>

<pallas_src>
import jax
import jax.numpy as jnp
from jax import lax
from jax.experimental import pallas as pl
from jax.experimental.pallas import tpu as pltpu

LEAKY_SLOPE = 0.01  # torch.nn.LeakyReLU default negative_slope


def _leaky(v):
    # identical to where(v>=0, v, slope*v) for 0 < slope < 1, but only mul+max
    return jnp.maximum(v, LEAKY_SLOPE * v)


def _num_tensorcores():
    """Best-effort TensorCores-per-chip (v7x: 2, v5e/v6e: 1)."""
    try:
        kind = jax.devices()[0].device_kind.lower()
    except Exception:
        return 1
    return 2 if "v7" in kind else 1


def _pick_batch_tile(B, L, Cin, Cout, K, num_cores):
    """Batch elements folded into one grid step.

    On single-TC chips the grid is a serial loop: take the whole batch in one
    step (per-step pipeline overhead ~0.35us dominates at small shapes).  On
    2-TC chips keep >=2 grid steps so both cores get work.  Cap by a rough
    VMEM budget so production batches stay within v7x's 64 MiB.
    """
    bytes_per_b = L * (Cin + Cout * (K + 3)) * 4   # activations + im2col-ish
    budget = 8 * 1024 * 1024                       # headroom for double-buffering
    tb_cap = max(1, min(B, budget // max(bytes_per_b, 1)))
    if num_cores >= 2 and B >= 2:
        tb_cap = min(tb_cap, max(1, B // 2))
    for tb in range(tb_cap, 0, -1):
        if B % tb == 0:
            return tb
    return 1


# ----------------------------------------------------------------------------
# Pallas kernel for one TCNBlock
# ----------------------------------------------------------------------------
def make_tcn_block_kernel(K, dilation, TB, L, Cin, Cout, final, has_res,
                          compute_dtype):

    def shift_right(h, s):
        # causal shift along time (lane axis): out[..., t] = h[..., t - s]
        if s == 0:
            return h
        zeros = jnp.zeros(h.shape[:-1] + (s,), h.dtype)
        return jnp.concatenate([zeros, h[..., :L - s]], axis=-1)

    def causal_conv(h_bf, w_ref, b_ref):
        # im2col along channels: ONE batched MXU push, contraction K*C.
        cols = [shift_right(h_bf, (K - 1 - k) * dilation) for k in range(K)]
        col = jnp.concatenate(cols, axis=1)                 # (TB, K*C, L) bf16
        w = jnp.broadcast_to(w_ref[...][None], (TB,) + w_ref.shape)
        y = jnp.einsum("bok,bkl->bol", w, col,
                       preferred_element_type=jnp.float32)  # (TB, Cout, L) f32
        return y + b_ref[...][None]                          # bias (Cout,1)

    def body(x_ref, w1_ref, b1_ref, w2_ref, b2_ref, wres_ref, bres_ref, o_ref):
        x = x_ref[...]                                       # (TB, Cin, L)
        x_bf = x.astype(compute_dtype)

        h1 = _leaky(causal_conv(x_bf, w1_ref, b1_ref))       # f32
        h2 = _leaky(causal_conv(h1.astype(compute_dtype), w2_ref, b2_ref))

        if has_res:
            wres = jnp.broadcast_to(wres_ref[...][None], (TB,) + wres_ref.shape)
            res = jnp.einsum("boc,bcl->bol", wres, x_bf,
                             preferred_element_type=jnp.float32)
            res = res + bres_ref[...][None]
        else:
            # identity residual uses the full-precision input (torch semantics)
            res = x.astype(jnp.float32)

        out = h2 + res
        if final:
            out = _leaky(out)
        o_ref[...] = out.astype(o_ref.dtype)

    if has_res:
        def kernel(x_ref, w1_ref, b1_ref, w2_ref, b2_ref, wres_ref, bres_ref,
                   o_ref):
            body(x_ref, w1_ref, b1_ref, w2_ref, b2_ref, wres_ref, bres_ref,
                 o_ref)
    else:
        def kernel(x_ref, w1_ref, b1_ref, w2_ref, b2_ref, o_ref):
            body(x_ref, w1_ref, b1_ref, w2_ref, b2_ref, None, None, o_ref)

    return kernel


def tcn_block_apply(x_bcl, w1_flat, b1, w2_flat, b2, wres, bres, *,
                    K, dilation, final, compute_dtype=jnp.bfloat16,
                    out_dtype=jnp.float32):
    """x_bcl: (B, Cin, L) torch layout; w1_flat: (Cout, K*Cin);
    w2_flat: (Cout, K*Cout); wres: (Cout, Cin) or None; biases (Cout, 1).
    Returns (B, Cout, L) in out_dtype (use bf16 to halve HBM writeback)."""
    B, Cin, L = x_bcl.shape
    Cout = w1_flat.shape[0]
    has_res = wres is not None

    TB = _pick_batch_tile(B, L, Cin, Cout, K, _num_tensorcores())
    grid = (B // TB,)

    kernel = make_tcn_block_kernel(K, dilation, TB, L, Cin, Cout, final,
                                   has_res, compute_dtype)

    # x is passed through untouched (no wrapper cast); weights/biases are tiny.
    args = [x_bcl,
            w1_flat.astype(compute_dtype), b1.astype(jnp.float32),
            w2_flat.astype(compute_dtype), b2.astype(jnp.float32)]
    in_specs = [
        pl.BlockSpec((TB, Cin, L), lambda b: (b, 0, 0)),
        pl.BlockSpec((Cout, K * Cin), lambda b: (0, 0)),
        pl.BlockSpec((Cout, 1), lambda b: (0, 0)),
        pl.BlockSpec((Cout, K * Cout), lambda b: (0, 0)),
        pl.BlockSpec((Cout, 1), lambda b: (0, 0)),
    ]
    if has_res:
        args += [wres.astype(compute_dtype), bres.astype(jnp.float32)]
        in_specs += [pl.BlockSpec((Cout, Cin), lambda b: (0, 0)),
                     pl.BlockSpec((Cout, 1), lambda b: (0, 0))]

    return pl.pallas_call(
        kernel,
        out_shape=jax.ShapeDtypeStruct((B, Cout, L), out_dtype),
        grid=grid,
        in_specs=in_specs,
        out_specs=pl.BlockSpec((TB, Cout, L), lambda b: (b, 0, 0)),
        compiler_params=pltpu.CompilerParams(
            dimension_semantics=("parallel",),
            vmem_limit_bytes=32 * 1024 * 1024),
    )(*args)


# ----------------------------------------------------------------------------
# Parameter construction (deterministic, synthetic) + weight norm
# ----------------------------------------------------------------------------
def weight_norm(v, g):
    # torch.nn.utils.weight_norm with dim=0 (no epsilon, matching torch)
    norm = jnp.sqrt(jnp.sum(v * v, axis=(1, 2), keepdims=True))
    return g.reshape(-1, 1, 1) * v / norm


def build_tcn_block_params(key, in_channels, out_channels, kernel_size):
    k0, k1, k2, k3, k4, k5, k6, k7 = jax.random.split(key, 8)
    v1 = jax.random.normal(k0, (out_channels, in_channels, kernel_size),
                           jnp.float32) * 0.3
    g1 = 0.5 + jax.random.uniform(k1, (out_channels,), jnp.float32)
    b1 = jax.random.normal(k2, (out_channels,), jnp.float32) * 0.1
    v2 = jax.random.normal(k3, (out_channels, out_channels, kernel_size),
                           jnp.float32) * 0.3
    g2 = 0.5 + jax.random.uniform(k4, (out_channels,), jnp.float32)
    b2 = jax.random.normal(k5, (out_channels,), jnp.float32) * 0.1
    if in_channels != out_channels:
        wres = jax.random.normal(k6, (out_channels, in_channels, 1),
                                 jnp.float32) * 0.3
        bres = jax.random.normal(k7, (out_channels,), jnp.float32) * 0.1
    else:
        wres, bres = None, None
    return dict(w1=weight_norm(v1, g1), b1=b1,
                w2=weight_norm(v2, g2), b2=b2,
                wres=wres, bres=bres)


# ----------------------------------------------------------------------------
# TCNBlock forward (Pallas) and pure-JAX reference
# ----------------------------------------------------------------------------
def tcn_block_forward(x_bcl, params, *, kernel_size, dilation, final,
                      compute_dtype=jnp.bfloat16, out_dtype=jnp.float32):
    """PyTorch-layout forward: x_bcl (B, C_in, L) -> (B, C_out, L).
    No transposes: the kernel works in (B, C, L) directly."""
    K = kernel_size
    Cout = params["w1"].shape[0]
    Cin = params["w1"].shape[1]
    # (Cout, Cin, K) -> (Cout, K*Cin) with flat index [o, k*Cin + i]
    w1 = jnp.transpose(params["w1"], (0, 2, 1)).reshape(Cout, K * Cin)
    w2 = jnp.transpose(params["w2"], (0, 2, 1)).reshape(Cout, K * Cout)
    b1 = params["b1"].reshape(Cout, 1)
    b2 = params["b2"].reshape(Cout, 1)
    if params["wres"] is None:
        wres, bres = None, None
    else:
        wres = params["wres"][:, :, 0]            # (Cout, Cin)
        bres = params["bres"].reshape(Cout, 1)
    return tcn_block_apply(x_bcl, w1, b1, w2, b2, wres, bres,
                           K=K, dilation=dilation, final=final,
                           compute_dtype=compute_dtype, out_dtype=out_dtype)


def _q(a, dtype):
    return a.astype(dtype).astype(jnp.float32)


def tcn_block_ref(x_bcl, params, *, kernel_size, dilation, final,
                  compute_dtype=jnp.bfloat16):
    """Pure-JAX reference mirroring the kernel's bf16 operand quantization
    (bf16 x bf16 products are exact in f32; only accumulation order differs).
    The identity residual uses the full-precision x, exactly like torch."""
    p = (kernel_size - 1) * dilation
    L = x_bcl.shape[-1]

    def conv(h, w_oik, b):
        y = lax.conv_general_dilated(
            _q(h, compute_dtype), _q(w_oik, compute_dtype),
            window_strides=(1,), padding=[(p, p)], rhs_dilation=(dilation,),
            dimension_numbers=("NCH", "OIH", "NCH"),
            precision=lax.Precision.HIGHEST)
        return y[:, :, :L] + b.reshape(1, -1, 1)   # chomp trailing p

    h = _leaky(conv(x_bcl, params["w1"], params["b1"]))
    h = _leaky(conv(h, params["w2"], params["b2"]))
    if params["wres"] is None:
        res = x_bcl.astype(jnp.float32)
    else:
        res = jnp.einsum("oc,bcl->bol",
                         _q(params["wres"][:, :, 0], compute_dtype),
                         _q(x_bcl, compute_dtype),
                         precision=lax.Precision.HIGHEST)
        res = res + params["bres"].reshape(1, -1, 1)
    out = h + res
    return _leaky(out) if final else out


# ----------------------------------------------------------------------------
if __name__ == "__main__":
    key = jax.random.PRNGKey(0)
    kx1, kp1, kx2, kp2 = jax.random.split(key, 4)

    # Config A: in_channels != out_channels -> 1x1-conv residual, final=False
    B, C_IN, C_OUT, L, K, D = 2, 4, 8, 16, 3, 2
    xA = jax.random.normal(kx1, (B, C_IN, L), jnp.float32)   # torch (B,C,L)
    pA = build_tcn_block_params(kp1, C_IN, C_OUT, K)
    yA = jax.block_until_ready(
        tcn_block_forward(xA, pA, kernel_size=K, dilation=D, final=False))
    assert yA.shape == (B, C_OUT, L), yA.shape
    refA = tcn_block_ref(xA, pA, kernel_size=K, dilation=D, final=False)
    errA = float(jnp.max(jnp.abs(yA - refA)))
    assert jnp.allclose(yA, refA, atol=2e-3, rtol=2e-3), errA

    # Config B: in_channels == out_channels -> identity residual, final=True
    B2, C, L2, K2, D2 = 2, 8, 16, 3, 4
    xB = jax.random.normal(kx2, (B2, C, L2), jnp.float32)
    pB = build_tcn_block_params(kp2, C, C, K2)
    yB = jax.block_until_ready(
        tcn_block_forward(xB, pB, kernel_size=K2, dilation=D2, final=True))
    assert yB.shape == (B2, C, L2), yB.shape
    refB = tcn_block_ref(xB, pB, kernel_size=K2, dilation=D2, final=True)
    errB = float(jnp.max(jnp.abs(yB - refB)))
    assert jnp.allclose(yB, refB, atol=2e-3, rtol=2e-3), errB

    print("KERNEL_OK")
</pallas_src>

<mosaic_0001>
module attributes {stable_mosaic.version = 11 : i64} {
  func.func @kernel(%arg0: i32, %arg1: memref<2x4x16xf32, #tpu.memory_space<vmem>>, %arg2: memref<8x12xbf16, #tpu.memory_space<vmem>>, %arg3: memref<8x1xf32, #tpu.memory_space<vmem>>, %arg4: memref<8x24xbf16, #tpu.memory_space<vmem>>, %arg5: memref<8x1xf32, #tpu.memory_space<vmem>>, %arg6: memref<8x4xbf16, #tpu.memory_space<vmem>>, %arg7: memref<8x1xf32, #tpu.memory_space<vmem>>, %arg8: memref<2x8x16xf32, #tpu.memory_space<vmem>>) attributes {dimension_semantics = [#tpu.dimension_semantics<parallel>], iteration_bounds = array<i64: 1>, scalar_prefetch = 0 : i64, scratch_operands = 0 : i64, tpu.core_type = #tpu.core_type<tc>, window_params = [{transform_indices = @transform_0, window_bounds = array<i64: 2, 4, 16>}, {pipeline_mode = #tpu.pipeline_mode<synchronous>, transform_indices = @transform_1, window_bounds = array<i64: 8, 12>}, {pipeline_mode = #tpu.pipeline_mode<synchronous>, transform_indices = @transform_2, window_bounds = array<i64: 8, 1>}, {pipeline_mode = #tpu.pipeline_mode<synchronous>, transform_indices = @transform_3, window_bounds = array<i64: 8, 24>}, {pipeline_mode = #tpu.pipeline_mode<synchronous>, transform_indices = @transform_4, window_bounds = array<i64: 8, 1>}, {pipeline_mode = #tpu.pipeline_mode<synchronous>, transform_indices = @transform_5, window_bounds = array<i64: 8, 4>}, {pipeline_mode = #tpu.pipeline_mode<synchronous>, transform_indices = @transform_6, window_bounds = array<i64: 8, 1>}, {transform_indices = @transform_7, window_bounds = array<i64: 2, 8, 16>}]} {
    %c0 = arith.constant 0 : index
    %c0_0 = arith.constant 0 : index
    %c0_1 = arith.constant 0 : index
    %0 = vector.load %arg1[%c0, %c0_0, %c0_1] : memref<2x4x16xf32, #tpu.memory_space<vmem>>, vector<2x4x16xf32>
    %1 = arith.truncf %0 : vector<2x4x16xf32> to vector<2x4x16xbf16>
    %cst = arith.constant 0.000000e+00 : bf16
    %2 = vector.broadcast %cst : bf16 to vector<2x4x4xbf16>
    %3 = vector.extract_strided_slice %1 {offsets = [0, 0, 0], sizes = [2, 4, 12], strides = [1, 1, 1]} : vector<2x4x16xbf16> to vector<2x4x12xbf16>
    %4 = tpu.concatenate %2, %3 in 2 : vector<2x4x4xbf16>, vector<2x4x12xbf16> -> vector<2x4x16xbf16>
    %cst_2 = arith.constant 0.000000e+00 : bf16
    %5 = vector.broadcast %cst_2 : bf16 to vector<2x4x2xbf16>
    %6 = vector.extract_strided_slice %1 {offsets = [0, 0, 0], sizes = [2, 4, 14], strides = [1, 1, 1]} : vector<2x4x16xbf16> to vector<2x4x14xbf16>
    %7 = tpu.concatenate %5, %6 in 2 : vector<2x4x2xbf16>, vector<2x4x14xbf16> -> vector<2x4x16xbf16>
    %8 = tpu.concatenate %4, %7, %1 in 1 : vector<2x4x16xbf16>, vector<2x4x16xbf16>, vector<2x4x16xbf16> -> vector<2x12x16xbf16>
    %c0_3 = arith.constant 0 : index
    %c0_4 = arith.constant 0 : index
    %9 = vector.load %arg2[%c0_3, %c0_4] : memref<8x12xbf16, #tpu.memory_space<vmem>>, vector<8x12xbf16>
    %10 = vector.shape_cast %9 : vector<8x12xbf16> to vector<1x8x12xbf16>
    %11 = vector.shape_cast %10 : vector<1x8x12xbf16> to vector<1x8x12xbf16>
    %12 = vector.broadcast %11 : vector<1x8x12xbf16> to vector<2x8x12xbf16>
    "tpu.trace_start"() <{level = 10 : i32, message = "bok,bkl->bol"}> : () -> ()
    %cst_5 = arith.constant dense<0.000000e+00> : vector<2x8x16xf32>
    %13 = tpu.matmul %12, %8, %cst_5 {dimension_numbers = #tpu.dot_dimension_numbers<[2], [1], [1], [2], [0, 0, 0, 1, 1, 2], [0], [0]>} : vector<2x8x12xbf16>, vector<2x12x16xbf16>, vector<2x8x16xf32> -> vector<2x8x16xf32>
    "tpu.trace_stop"() : () -> ()
    %c0_6 = arith.constant 0 : index
    %c0_7 = arith.constant 0 : index
    %14 = vector.load %arg3[%c0_6, %c0_7] : memref<8x1xf32, #tpu.memory_space<vmem>>, vector<8x1xf32>
    %15 = vector.shape_cast %14 : vector<8x1xf32> to vector<1x8x1xf32>
    %16 = vector.broadcast %15 : vector<1x8x1xf32> to vector<2x8x16xf32>
    %17 = arith.addf %13, %16 : vector<2x8x16xf32>
    %cst_8 = arith.constant 0.00999999977 : f32
    %18 = vector.broadcast %cst_8 : f32 to vector<2x8x16xf32>
    %19 = arith.mulf %18, %17 : vector<2x8x16xf32>
    %20 = arith.maximumf %17, %19 : vector<2x8x16xf32>
    %21 = arith.truncf %20 : vector<2x8x16xf32> to vector<2x8x16xbf16>
    %cst_9 = arith.constant 0.000000e+00 : bf16
    %22 = vector.broadcast %cst_9 : bf16 to vector<2x8x4xbf16>
    %23 = vector.extract_strided_slice %21 {offsets = [0, 0, 0], sizes = [2, 8, 12], strides = [1, 1, 1]} : vector<2x8x16xbf16> to vector<2x8x12xbf16>
    %24 = tpu.concatenate %22, %23 in 2 : vector<2x8x4xbf16>, vector<2x8x12xbf16> -> vector<2x8x16xbf16>
    %cst_10 = arith.constant 0.000000e+00 : bf16
    %25 = vector.broadcast %cst_10 : bf16 to vector<2x8x2xbf16>
    %26 = vector.extract_strided_slice %21 {offsets = [0, 0, 0], sizes = [2, 8, 14], strides = [1, 1, 1]} : vector<2x8x16xbf16> to vector<2x8x14xbf16>
    %27 = tpu.concatenate %25, %26 in 2 : vector<2x8x2xbf16>, vector<2x8x14xbf16> -> vector<2x8x16xbf16>
    %28 = tpu.concatenate %24, %27, %21 in 1 : vector<2x8x16xbf16>, vector<2x8x16xbf16>, vector<2x8x16xbf16> -> vector<2x24x16xbf16>
    %c0_11 = arith.constant 0 : index
    %c0_12 = arith.constant 0 : index
    %29 = vector.load %arg4[%c0_11, %c0_12] : memref<8x24xbf16, #tpu.memory_space<vmem>>, vector<8x24xbf16>
    %30 = vector.shape_cast %29 : vector<8x24xbf16> to vector<1x8x24xbf16>
    %31 = vector.shape_cast %30 : vector<1x8x24xbf16> to vector<1x8x24xbf16>
    %32 = vector.broadcast %31 : vector<1x8x24xbf16> to vector<2x8x24xbf16>
    "tpu.trace_start"() <{level = 10 : i32, message = "bok,bkl->bol"}> : () -> ()
    %cst_13 = arith.constant dense<0.000000e+00> : vector<2x8x16xf32>
    %33 = tpu.matmul %32, %28, %cst_13 {dimension_numbers = #tpu.dot_dimension_numbers<[2], [1], [1], [2], [0, 0, 0, 1, 1, 2], [0], [0]>} : vector<2x8x24xbf16>, vector<2x24x16xbf16>, vector<2x8x16xf32> -> vector<2x8x16xf32>
    "tpu.trace_stop"() : () -> ()
    %c0_14 = arith.constant 0 : index
    %c0_15 = arith.constant 0 : index
    %34 = vector.load %arg5[%c0_14, %c0_15] : memref<8x1xf32, #tpu.memory_space<vmem>>, vector<8x1xf32>
    %35 = vector.shape_cast %34 : vector<8x1xf32> to vector<1x8x1xf32>
    %36 = vector.broadcast %35 : vector<1x8x1xf32> to vector<2x8x16xf32>
    %37 = arith.addf %33, %36 : vector<2x8x16xf32>
    %cst_16 = arith.constant 0.00999999977 : f32
    %38 = vector.broadcast %cst_16 : f32 to vector<2x8x16xf32>
    %39 = arith.mulf %38, %37 : vector<2x8x16xf32>
    %40 = arith.maximumf %37, %39 : vector<2x8x16xf32>
    %c0_17 = arith.constant 0 : index
    %c0_18 = arith.constant 0 : index
    %41 = vector.load %arg6[%c0_17, %c0_18] : memref<8x4xbf16, #tpu.memory_space<vmem>>, vector<8x4xbf16>
    %42 = vector.shape_cast %41 : vector<8x4xbf16> to vector<1x8x4xbf16>
    %43 = vector.shape_cast %42 : vector<1x8x4xbf16> to vector<1x8x4xbf16>
    %44 = vector.broadcast %43 : vector<1x8x4xbf16> to vector<2x8x4xbf16>
    "tpu.trace_start"() <{level = 10 : i32, message = "boc,bcl->bol"}> : () -> ()
    %cst_19 = arith.constant dense<0.000000e+00> : vector<2x8x16xf32>
    %45 = tpu.matmul %44, %1, %cst_19 {dimension_numbers = #tpu.dot_dimension_numbers<[2], [1], [1], [2], [0, 0, 0, 1, 1, 2], [0], [0]>} : vector<2x8x4xbf16>, vector<2x4x16xbf16>, vector<2x8x16xf32> -> vector<2x8x16xf32>
    "tpu.trace_stop"() : () -> ()
    %c0_20 = arith.constant 0 : index
    %c0_21 = arith.constant 0 : index
    %46 = vector.load %arg7[%c0_20, %c0_21] : memref<8x1xf32, #tpu.memory_space<vmem>>, vector<8x1xf32>
    %47 = vector.shape_cast %46 : vector<8x1xf32> to vector<1x8x1xf32>
    %48 = vector.broadcast %47 : vector<1x8x1xf32> to vector<2x8x16xf32>
    %49 = arith.addf %45, %48 : vector<2x8x16xf32>
    %50 = arith.addf %40, %49 : vector<2x8x16xf32>
    %c0_22 = arith.constant 0 : index
    %c0_23 = arith.constant 0 : index
    %c0_24 = arith.constant 0 : index
    %51 = vector.load %arg8[%c0_22, %c0_23, %c0_24] : memref<2x8x16xf32, #tpu.memory_space<vmem>>, vector<2x8x16xf32>
    tpu.vector_store %arg8[%c0_22, %c0_23, %c0_24], %50 {strides = array<i32>} : memref<2x8x16xf32, #tpu.memory_space<vmem>>, vector<2x8x16xf32>,
    return
  }
  func.func @transform_0(%arg0: i32) -> (i32, i32, i32) {
    %c0_i32 = arith.constant 0 : i32
    %c0_i32_0 = arith.constant 0 : i32
    %c0_i32_1 = arith.constant 0 : i32
    return %arg0, %c0_i32, %c0_i32_0 : i32, i32, i32
  }
  func.func @transform_1(%arg0: i32) -> (i32, i32) {
    %c0_i32 = arith.constant 0 : i32
    %c0_i32_0 = arith.constant 0 : i32
    %c0_i32_1 = arith.constant 0 : i32
    return %c0_i32, %c0_i32_0 : i32, i32
  }
  func.func @transform_2(%arg0: i32) -> (i32, i32) {
    %c0_i32 = arith.constant 0 : i32
    %c0_i32_0 = arith.constant 0 : i32
    %c0_i32_1 = arith.constant 0 : i32
    return %c0_i32, %c0_i32_0 : i32, i32
  }
  func.func @transform_3(%arg0: i32) -> (i32, i32) {
    %c0_i32 = arith.constant 0 : i32
    %c0_i32_0 = arith.constant 0 : i32
    %c0_i32_1 = arith.constant 0 : i32
    return %c0_i32, %c0_i32_0 : i32, i32
  }
  func.func @transform_4(%arg0: i32) -> (i32, i32) {
    %c0_i32 = arith.constant 0 : i32
    %c0_i32_0 = arith.constant 0 : i32
    %c0_i32_1 = arith.constant 0 : i32
    return %c0_i32, %c0_i32_0 : i32, i32
  }
  func.func @transform_5(%arg0: i32) -> (i32, i32) {
    %c0_i32 = arith.constant 0 : i32
    %c0_i32_0 = arith.constant 0 : i32
    %c0_i32_1 = arith.constant 0 : i32
    return %c0_i32, %c0_i32_0 : i32, i32
  }
  func.func @transform_6(%arg0: i32) -> (i32, i32) {
    %c0_i32 = arith.constant 0 : i32
    %c0_i32_0 = arith.constant 0 : i32
    %c0_i32_1 = arith.constant 0 : i32
    return %c0_i32, %c0_i32_0 : i32, i32
  }
  func.func @transform_7(%arg0: i32) -> (i32, i32, i32) {
    %c0_i32 = arith.constant 0 : i32
    %c0_i32_0 = arith.constant 0 : i32
    %c0_i32_1 = arith.constant 0 : i32
    return %arg0, %c0_i32, %c0_i32_0 : i32, i32, i32
  }
}

</mosaic_0001>

<llo_original>
// kernel: tpu_custom_call.1
$region0: #{tpu_custom_call.1}
  #allocation0 [shape = 'u32[]', space=smem, size = 0x4, offset = 0x4, fixed_abs, tag = 'smem constant byte address 0x4 - core index']
  #allocation1 [shape = 'u32[144,128]{1,0:T(1,128)}', space=vmem, size = 0x12000, scoped, tag = 'internal scratch']
  %s0 = inlined_call_operand.vmem [shape: f32[2,4,16], index: 0, kind: input, shape index: {}]
  %s1 = inlined_call_operand.vmem [shape: bf16[8,12], index: 1, kind: input, shape index: {}]
  %s2 = inlined_call_operand.vmem [shape: f32[8,1], index: 2, kind: input, shape index: {}]
  %s3 = inlined_call_operand.vmem [shape: bf16[8,24], index: 3, kind: input, shape index: {}]
  %s4 = inlined_call_operand.vmem [shape: f32[8,1], index: 4, kind: input, shape index: {}]
  %s5 = inlined_call_operand.vmem [shape: bf16[8,4], index: 5, kind: input, shape index: {}]
  %s6 = inlined_call_operand.vmem [shape: f32[8,1], index: 6, kind: input, shape index: {}]
  %s7 = inlined_call_operand.hbm [shape: f32[2,8,16], index: 7, kind: output, shape index: {}]
  %s8 = sld [smem:[#allocation0]]
  $region38: #{tpu_custom_call.1} parent=0
    _
  %s10 = ssub.s32 1, %s8
  %s11 = scalar_select 0, %s10, %s8
  $region1: #{tpu_custom_call.1} parent=0
    #allocation2 [shape = 'u8[8192]{0}', space=vmem, size = 0x2000, scoped, tag = 'output window, operand 0, single buffered']
    #allocation3 [shape = 's32[1]{0}', space=sflag, size = 0x4, scoped, tag = 'scoped memory for tpu_custom_call.1']
    %12 = vsyncpa [#allocation3], 0
    // Predicated region
    $region2: #{tpu_custom_call.1} parent=1 // pred_check
      _
    $region3: #{tpu_custom_call.1} parent=1 // pred_check_branch
      %14 = sbr.rel (0) target = $region5
    $region4: #{tpu_custom_call.1} parent=1 // pred_region
      _
    $region5: #{tpu_custom_call.1} parent=1 // pred_fallthru
      _
    // Predicated region
    $region6: #{tpu_custom_call.1} parent=1 // pred_check
      _
    $region7: #{tpu_custom_call.1} parent=1 // pred_check_branch
      %16 = sbr.rel (0) target = $region9
    $region8: #{tpu_custom_call.1} parent=1 // pred_region
      _
    $region9: #{tpu_custom_call.1} parent=1 // pred_fallthru
      _
    // Predicated region
    $region10: #{tpu_custom_call.1} parent=1 // pred_check
      _
    $region11: #{tpu_custom_call.1} parent=1 // pred_check_branch
      %18 = sbr.rel (0) target = $region13
    $region12: #{tpu_custom_call.1} parent=1 // pred_region
      _
    $region13: #{tpu_custom_call.1} parent=1 // pred_fallthru
      _
    // Predicated region
    $region14: #{tpu_custom_call.1} parent=1 // pred_check
      _
    $region15: #{tpu_custom_call.1} parent=1 // pred_check_branch
      %20 = sbr.rel (0) target = $region17
    $region16: #{tpu_custom_call.1} parent=1 // pred_region
      _
    $region17: #{tpu_custom_call.1} parent=1 // pred_fallthru
      _
    // Predicated region
    $region18: #{tpu_custom_call.1} parent=1 // pred_check
      _
    $region19: #{tpu_custom_call.1} parent=1 // pred_check_branch
      %22 = sbr.rel (0) target = $region21
    $region20: #{tpu_custom_call.1} parent=1 // pred_region
      _
    $region21: #{tpu_custom_call.1} parent=1 // pred_fallthru
      _
    // Predicated region
    $region22: #{tpu_custom_call.1} parent=1 // pred_check
      _
    $region23: #{tpu_custom_call.1} parent=1 // pred_check_branch
      %24 = sbr.rel (0) target = $region25
    $region24: #{tpu_custom_call.1} parent=1 // pred_region
      _
    $region25: #{tpu_custom_call.1} parent=1 // pred_fallthru
      _
    // Predicated region
    $region26: #{tpu_custom_call.1} parent=1 // pred_check
      _
    $region27: #{tpu_custom_call.1} parent=1 // pred_check_branch
      %26 = sbr.rel (0) target = $region29
    $region28: #{tpu_custom_call.1} parent=1 // pred_region
      _
    $region29: #{tpu_custom_call.1} parent=1 // pred_fallthru
      _
    %v28 = vld [vmem:[%s0] sm:$0xf]
    %v29 = vld [vmem:[%s0 + $0x4] sm:$0xf]
    %v30 = vpack.c.bf16 %v28, %v28
    %v31 = vpack.c.bf16 %v29, %v29
    %34 = vrot.lane.b32.xlu0 %v30, 4
    %v35 = vpop.permute.xlu0 %34
    %36 = vrot.lane.b32.xlu0 %v31, 4
    %v37 = vpop.permute.xlu0 %36
    %vm38 = vcmask 31744
    %v41 = vsel %vm38, 0, %v35
    %v43 = vsel %vm38, 0, %v37
    %44 = vrot.lane.b32.xlu0 %v30, 2
    %v45 = vpop.permute.xlu0 %44
    %46 = vrot.lane.b32.xlu0 %v31, 2
    %v47 = vpop.permute.xlu0 %46
    %vm48 = vcmask 15360
    %v50 = vsel %vm48, 0, %v45
    %v52 = vsel %vm48, 0, %v47
    %v55 = vrot.slane %v50, 6
    %v56 = vrot.slane %v52, 6
    %v57 = vrot.slane %v30, 4
    %v58 = vrot.slane %v31, 4
    %vm59 = vcmask 1041408
    %v61 = vsel %vm59, %v41, %v55
    %v63 = vsel %vm59, %v43, %v56
    %vm64 = vcmask 1043456
    %v66 = vsel %vm64, %v61, %v57
    %v68 = vsel %vm64, %v63, %v58
    %v69 = vld [vmem:[%s1] sm:$0xf]
    %v70 = vld [vmem:[%s2] sm:$0xff]
    %72 = vset.pattern.permute.xlu0 0
    %73 = vperm.xlu0 %72, %v70
    %v74 = vpop.permute.xlu0 %73
    %vm76 = vcmask 97280
    %v78 = vsel %vm76, %v69, 0
    %vm80 = vcmask 1045504
    %v81 = vsel %vm80, %v66, 0
    %83 = vmatprep.subr.bf16.mxu0 0
    %84 = vmatpush1.bf16.msra.mxu0 0
    %85 = vmatprep.subr.bf16.mxu0 0
    %86 = vmatpush1.bf16.msra.mxu0 0
    %87 = vmatprep.subr.bf16.mxu0 0
    %88 = vmatpush1.bf16.msra.mxu0 0
    %89 = vmatprep.subr.bf16.mxu0 0
    %90 = vmatpush1.bf16.msra.mxu0 0
    %91 = vmatprep.subr.bf16.mxu0 0
    %92 = vmatpush1.bf16.msra.mxu0 0
    %93 = vmatprep.subr.bf16.mxu0 0
    %94 = vmatpush1.bf16.msra.mxu0 0
    %95 = vmatprep.subr.bf16.mxu0 0
    %96 = vmatpush1.bf16.msra.mxu0 0
    %97 = vmatprep.subr.bf16.mxu0 0
    %98 = vmatpush1.bf16.msra.mxu0 %v81
    %99 = vmatprep.subr.bf16.mxu0 0
    %100 = vmatpush2.bf16.msra.mxu0 0
    %101 = vmatprep.subr.bf16.mxu0 0
    %102 = vmatpush2.bf16.msra.mxu0 0
    %103 = vmatprep.subr.bf16.mxu0 0
    %104 = vmatpush2.bf16.msra.mxu0 0
    %105 = vmatprep.subr.bf16.mxu0 0
    %106 = vmatpush2.bf16.msra.mxu0 0
    %107 = vmatprep.subr.bf16.mxu0 0
    %108 = vmatpush2.bf16.msra.mxu0 0
    %109 = vmatprep.subr.bf16.mxu0 0
    %110 = vmatpush2.bf16.msra.mxu0 0
    %111 = vmatprep.subr.bf16.mxu0 0
    %112 = vmatpush2.bf16.msra.mxu0 0
    %113 = vmatprep.subr.bf16.mxu0 0
    %114 = vmatpush2.bf16.msra.mxu0 0
    %115 = vmatprep.mubr.bf16.mxu0 0
    %116 = vmatmul.mubr.bf16.gmra.mxu0 %v78
    %v117 = vpop.f32.mrf.mxu0
    %v118 = vadd.f32 %v74, %v117
    %v119 = vpop.f32.mrf.mxu0
    %v120 = vpop.f32.mrf.mxu0
    %v121 = vpop.f32.mrf.mxu0
    %122 = vdwg.mxu0
    %v123 = vsel %vm80, %v68, 0
    %125 = vmatprep.subr.bf16.mxu0 0
    %126 = vmatpush1.bf16.msra.mxu0 0
    %127 = vmatprep.subr.bf16.mxu0 0
    %128 = vmatpush1.bf16.msra.mxu0 0
    %129 = vmatprep.subr.bf16.mxu0 0
    %130 = vmatpush1.bf16.msra.mxu0 0
    %131 = vmatprep.subr.bf16.mxu0 0
    %132 = vmatpush1.bf16.msra.mxu0 0
    %133 = vmatprep.subr.bf16.mxu0 0
    %134 = vmatpush1.bf16.msra.mxu0 0
    %135 = vmatprep.subr.bf16.mxu0 0
    %136 = vmatpush1.bf16.msra.mxu0 0
    %137 = vmatprep.subr.bf16.mxu0 0
    %138 = vmatpush1.bf16.msra.mxu0 0
    %139 = vmatprep.subr.bf16.mxu0 0
    %140 = vmatpush1.bf16.msra.mxu0 %v123
    %141 = vmatprep.subr.bf16.mxu0 0
    %142 = vmatpush2.bf16.msra.mxu0 0
    %143 = vmatprep.subr.bf16.mxu0 0
    %144 = vmatpush2.bf16.msra.mxu0 0
    %145 = vmatprep.subr.bf16.mxu0 0
    %146 = vmatpush2.bf16.msra.mxu0 0
    %147 = vmatprep.subr.bf16.mxu0 0
    %148 = vmatpush2.bf16.msra.mxu0 0
    %149 = vmatprep.subr.bf16.mxu0 0
    %150 = vmatpush2.bf16.msra.mxu0 0
    %151 = vmatprep.subr.bf16.mxu0 0
    %152 = vmatpush2.bf16.msra.mxu0 0
    %153 = vmatprep.subr.bf16.mxu0 0
    %154 = vmatpush2.bf16.msra.mxu0 0
    %155 = vmatprep.subr.bf16.mxu0 0
    %156 = vmatpush2.bf16.msra.mxu0 0
    %157 = vmatprep.mubr.bf16.mxu0 0
    %158 = vmatmul.mubr.bf16.gmra.mxu0 %v78
    %v159 = vpop.f32.mrf.mxu0
    %v160 = vadd.f32 %v74, %v159
    %v161 = vpop.f32.mrf.mxu0
    %v162 = vpop.f32.mrf.mxu0
    %v163 = vpop.f32.mrf.mxu0
    %164 = vdwg.mxu0
    %v165 = vmul.f32 %v118, 0.01
    %v166 = vmul.f32 %v160, 0.01
    %v167 = vmax.f32 %v118, %v165
    %v168 = vmax.f32 %v160, %v166
    %v169 = vpack.c.bf16 %v167, %v167
    %v170 = vpack.c.bf16 %v168, %v168
    %173 = vrot.lane.b32.xlu0 %v169, 4
    %v174 = vpop.permute.xlu0 %173
    %175 = vrot.lane.b32.xlu0 %v170, 4
    %v176 = vpop.permute.xlu0 %175
    %v178 = vsel %vm38, 0, %v174
    %v180 = vsel %vm38, 0, %v176
    %181 = vrot.lane.b32.xlu0 %v169, 2
    %v182 = vpop.permute.xlu0 %181
    %183 = vrot.lane.b32.xlu0 %v170, 2
    %v184 = vpop.permute.xlu0 %183
    %v186 = vsel %vm48, 0, %v182
    %v188 = vsel %vm48, 0, %v184
    %v191 = vrot.slane %v186, 4
    %v192 = vrot.slane %v188, 4
    %v194 = vsel %vm64, %v178, %v191
    %v197 = vsel %vm64, %v180, %v192
    %v199 = vld [vmem:[%s3] sm:$0xf]
    %v200 = vld [vmem:[%s4] sm:$0xff]
    %202 = vset.pattern.permute.xlu0 0
    %203 = vperm.xlu0 %202, %v200
    %v204 = vpop.permute.xlu0 %203
    %vm206 = vcmask 195584
    %v208 = vsel %vm206, %v199, 0
    %v211 = vsel %vm64, %v169, 0
    %213 = vmatprep.subr.bf16.mxu0 0
    %214 = vmatpush1.bf16.msra.mxu0 0
    %215 = vmatprep.subr.bf16.mxu0 0
    %216 = vmatpush1.bf16.msra.mxu0 0
    %217 = vmatprep.subr.bf16.mxu0 0
    %218 = vmatpush1.bf16.msra.mxu0 0
    %219 = vmatprep.subr.bf16.mxu0 0
    %220 = vmatpush1.bf16.msra.mxu0 0
    %221 = vmatprep.subr.bf16.mxu0 0
    %222 = vmatpush1.bf16.msra.mxu0 0
    %223 = vmatprep.subr.bf16.mxu0 0
    %224 = vmatpush1.bf16.msra.mxu0 0
    %225 = vmatprep.subr.bf16.mxu0 0
    %226 = vmatpush1.bf16.msra.mxu0 %v211
    %227 = vmatprep.subr.bf16.mxu0 0
    %228 = vmatpush1.bf16.msra.mxu0 %v194
    %229 = vmatprep.subr.bf16.mxu0 0
    %230 = vmatpush2.bf16.msra.mxu0 0
    %231 = vmatprep.subr.bf16.mxu0 0
    %232 = vmatpush2.bf16.msra.mxu0 0
    %233 = vmatprep.subr.bf16.mxu0 0
    %234 = vmatpush2.bf16.msra.mxu0 0
    %235 = vmatprep.subr.bf16.mxu0 0
    %236 = vmatpush2.bf16.msra.mxu0 0
    %237 = vmatprep.subr.bf16.mxu0 0
    %238 = vmatpush2.bf16.msra.mxu0 0
    %239 = vmatprep.subr.bf16.mxu0 0
    %240 = vmatpush2.bf16.msra.mxu0 0
    %241 = vmatprep.subr.bf16.mxu0 0
    %242 = vmatpush2.bf16.msra.mxu0 0
    %243 = vmatprep.subr.bf16.mxu0 0
    %244 = vmatpush2.bf16.msra.mxu0 0
    %245 = vmatprep.mubr.bf16.mxu0 0
    %246 = vmatmul.mubr.bf16.gmra.mxu0 %v208
    %v247 = vpop.f32.mrf.mxu0
    %v248 = vadd.f32 %v204, %v247
    %v249 = vpop.f32.mrf.mxu0
    %v250 = vpop.f32.mrf.mxu0
    %v251 = vpop.f32.mrf.mxu0
    %252 = vdwg.mxu0
    %v254 = vsel %vm64, %v170, 0
    %256 = vmatprep.subr.bf16.mxu0 0
    %257 = vmatpush1.bf16.msra.mxu0 0
    %258 = vmatprep.subr.bf16.mxu0 0
    %259 = vmatpush1.bf16.msra.mxu0 0
    %260 = vmatprep.subr.bf16.mxu0 0
    %261 = vmatpush1.bf16.msra.mxu0 0
    %262 = vmatprep.subr.bf16.mxu0 0
    %263 = vmatpush1.bf16.msra.mxu0 0
    %264 = vmatprep.subr.bf16.mxu0 0
    %265 = vmatpush1.bf16.msra.mxu0 0
    %266 = vmatprep.subr.bf16.mxu0 0
    %267 = vmatpush1.bf16.msra.mxu0 0
    %268 = vmatprep.subr.bf16.mxu0 0
    %269 = vmatpush1.bf16.msra.mxu0 %v254
    %270 = vmatprep.subr.bf16.mxu0 0
    %271 = vmatpush1.bf16.msra.mxu0 %v197
    %272 = vmatprep.subr.bf16.mxu0 0
    %273 = vmatpush2.bf16.msra.mxu0 0
    %274 = vmatprep.subr.bf16.mxu0 0
    %275 = vmatpush2.bf16.msra.mxu0 0
    %276 = vmatprep.subr.bf16.mxu0 0
    %277 = vmatpush2.bf16.msra.mxu0 0
    %278 = vmatprep.subr.bf16.mxu0 0
    %279 = vmatpush2.bf16.msra.mxu0 0
    %280 = vmatprep.subr.bf16.mxu0 0
    %281 = vmatpush2.bf16.msra.mxu0 0
    %282 = vmatprep.subr.bf16.mxu0 0
    %283 = vmatpush2.bf16.msra.mxu0 0
    %284 = vmatprep.subr.bf16.mxu0 0
    %285 = vmatpush2.bf16.msra.mxu0 0
    %286 = vmatprep.subr.bf16.mxu0 0
    %287 = vmatpush2.bf16.msra.mxu0 0
    %288 = vmatprep.mubr.bf16.mxu0 0
    %289 = vmatmul.mubr.bf16.gmra.mxu0 %v208
    %v290 = vpop.f32.mrf.mxu0
    %v291 = vadd.f32 %v204, %v290
    %v292 = vpop.f32.mrf.mxu0
    %v293 = vpop.f32.mrf.mxu0
    %v294 = vpop.f32.mrf.mxu0
    %295 = vdwg.mxu0
    %v296 = vmul.f32 %v248, 0.01
    %v297 = vmul.f32 %v291, 0.01
    %v298 = vmax.f32 %v248, %v296
    %v299 = vmax.f32 %v291, %v297
    %v300 = vld [vmem:[%s5] sm:$0xf]
    %v301 = vld [vmem:[%s6] sm:$0xff]
    %303 = vset.pattern.permute.xlu0 0
    %304 = vperm.xlu0 %303, %v301
    %v305 = vpop.permute.xlu0 %304
    %v308 = vsel %vm38, %v300, 0
    %v311 = vsel %vm59, %v30, 0
    %313 = vmatprep.subr.bf16.mxu0 0
    %314 = vmatpush1.bf16.msra.mxu0 0
    %315 = vmatprep.subr.bf16.mxu0 0
    %316 = vmatpush1.bf16.msra.mxu0 0
    %317 = vmatprep.subr.bf16.mxu0 0
    %318 = vmatpush1.bf16.msra.mxu0 0
    %319 = vmatprep.subr.bf16.mxu0 0
    %320 = vmatpush1.bf16.msra.mxu0 0
    %321 = vmatprep.subr.bf16.mxu0 0
    %322 = vmatpush1.bf16.msra.mxu0 0
    %323 = vmatprep.subr.bf16.mxu0 0
    %324 = vmatpush1.bf16.msra.mxu0 0
    %325 = vmatprep.subr.bf16.mxu0 0
    %326 = vmatpush1.bf16.msra.mxu0 0
    %327 = vmatprep.subr.bf16.mxu0 0
    %328 = vmatpush1.bf16.msra.mxu0 %v311
    %329 = vmatprep.subr.bf16.mxu0 0
    %330 = vmatpush2.bf16.msra.mxu0 0
    %331 = vmatprep.subr.bf16.mxu0 0
    %332 = vmatpush2.bf16.msra.mxu0 0
    %333 = vmatprep.subr.bf16.mxu0 0
    %334 = vmatpush2.bf16.msra.mxu0 0
    %335 = vmatprep.subr.bf16.mxu0 0
    %336 = vmatpush2.bf16.msra.mxu0 0
    %337 = vmatprep.subr.bf16.mxu0 0
    %338 = vmatpush2.bf16.msra.mxu0 0
    %339 = vmatprep.subr.bf16.mxu0 0
    %340 = vmatpush2.bf16.msra.mxu0 0
    %341 = vmatprep.subr.bf16.mxu0 0
    %342 = vmatpush2.bf16.msra.mxu0 0
    %343 = vmatprep.subr.bf16.mxu0 0
    %344 = vmatpush2.bf16.msra.mxu0 0
    %345 = vmatprep.mubr.bf16.mxu0 0
    %346 = vmatmul.mubr.bf16.gmra.mxu0 %v308
    %v347 = vpop.f32.mrf.mxu0
    %v348 = vadd.f32 %v305, %v347
    %v349 = vpop.f32.mrf.mxu0
    %v350 = vpop.f32.mrf.mxu0
    %v351 = vpop.f32.mrf.mxu0
    %352 = vdwg.mxu0
    %v354 = vsel %vm59, %v31, 0
    %356 = vmatprep.subr.bf16.mxu0 0
    %357 = vmatpush1.bf16.msra.mxu0 0
    %358 = vmatprep.subr.bf16.mxu0 0
    %359 = vmatpush1.bf16.msra.mxu0 0
    %360 = vmatprep.subr.bf16.mxu0 0
    %361 = vmatpush1.bf16.msra.mxu0 0
    %362 = vmatprep.subr.bf16.mxu0 0
    %363 = vmatpush1.bf16.msra.mxu0 0
    %364 = vmatprep.subr.bf16.mxu0 0
    %365 = vmatpush1.bf16.msra.mxu0 0
    %366 = vmatprep.subr.bf16.mxu0 0
    %367 = vmatpush1.bf16.msra.mxu0 0
    %368 = vmatprep.subr.bf16.mxu0 0
    %369 = vmatpush1.bf16.msra.mxu0 0
    %370 = vmatprep.subr.bf16.mxu0 0
    %371 = vmatpush1.bf16.msra.mxu0 %v354
    %372 = vmatprep.subr.bf16.mxu0 0
    %373 = vmatpush2.bf16.msra.mxu0 0
    %374 = vmatprep.subr.bf16.mxu0 0
    %375 = vmatpush2.bf16.msra.mxu0 0
    %376 = vmatprep.subr.bf16.mxu0 0
    %377 = vmatpush2.bf16.msra.mxu0 0
    %378 = vmatprep.subr.bf16.mxu0 0
    %379 = vmatpush2.bf16.msra.mxu0 0
    %380 = vmatprep.subr.bf16.mxu0 0
    %381 = vmatpush2.bf16.msra.mxu0 0
    %382 = vmatprep.subr.bf16.mxu0 0
    %383 = vmatpush2.bf16.msra.mxu0 0
    %384 = vmatprep.subr.bf16.mxu0 0
    %385 = vmatpush2.bf16.msra.mxu0 0
    %386 = vmatprep.subr.bf16.mxu0 0
    %387 = vmatpush2.bf16.msra.mxu0 0
    %388 = vmatprep.mubr.bf16.mxu0 0
    %389 = vmatmul.mubr.bf16.gmra.mxu0 %v308
    %v390 = vpop.f32.mrf.mxu0
    %v391 = vadd.f32 %v305, %v390
    %v392 = vpop.f32.mrf.mxu0
    %v393 = vpop.f32.mrf.mxu0
    %v394 = vpop.f32.mrf.mxu0
    %395 = vdwg.mxu0
    %v396 = vadd.f32 %v298, %v348
    %v397 = vadd.f32 %v299, %v391
    %vm398 = vcmask 130048
    %399 = vst.msk [vmem:[#allocation2] sm:$0xff] %vm398, %v396
    %400 = vst.msk [vmem:[#allocation2 + $0x8] sm:$0xff] %vm398, %v397
    // Predicated region
    $region30: #{tpu_custom_call.1} parent=1 // pred_check
      _
    $region31: #{tpu_custom_call.1} parent=1 // pred_check_branch
      %402 = sbr.rel (0) target = $region33
    $region32: #{tpu_custom_call.1} parent=1 // pred_region
      %s404 = ssub.s32 256, 256
      %405 = vsyncadd [#allocation3], %s404
      %s406 = sshll.u32 [#allocation2], 4
      %s407 = int_to_ptr.vmem [resolvable:$true] %s406
      %412 = dma.vmem_to_hbm [thread:$0]  %s407, 256, %s7, [#allocation3], 128, 128, 8
    $region33: #{tpu_custom_call.1} parent=1 // pred_fallthru
      _
    // Predicated region
    $region34: #{tpu_custom_call.1} parent=1 // pred_check
      _
    $region35: #{tpu_custom_call.1} parent=1 // pred_check_branch
      %414 = sbr.rel (0) target = $region37
    $region36: #{tpu_custom_call.1} parent=1 // pred_region
      %415 = dma.done [#allocation3], 256
    $region37: #{tpu_custom_call.1} parent=1 // pred_fallthru
      _
    %416 = vsyncpa [#allocation3], 1

</llo_original>
